<compile_context>
chip_gen: v5e
topology: v5e:2x2
jax: 0.10.0
libtpu: 0.0.40
codegen_flags: <defaults>
</compile_context>

<pallas_src>
import functools
import math

import jax
import jax.numpy as jnp
from jax.experimental import pallas as pl
from jax.experimental.pallas import tpu as pltpu

_VMEM_LIMIT = 64 * 1024 * 1024  # fits every generation (v7x physical = 64 MiB)


# ----------------------------------------------------------------------------
# small helpers used inside kernels
# ----------------------------------------------------------------------------
def _gelu(x):
    # TODO(synk): PyTorch nn.GELU / F.gelu default is the exact erf GELU;
    # we use the tanh approximation (robust Mosaic lowering).
    c = math.sqrt(2.0 / math.pi)
    return 0.5 * x * (1.0 + jnp.tanh(c * (x + 0.044715 * x * x * x)))


def _layernorm(x, g, b, eps=1e-5):
    mean = jnp.mean(x, axis=-1, keepdims=True)
    var = jnp.mean((x - mean) ** 2, axis=-1, keepdims=True)
    return (x - mean) * jax.lax.rsqrt(var + eps) * g + b


def _resident_spec(shape):
    """BlockSpec for a grid-invariant (resident) weight: single VMEM buffer."""
    return pl.BlockSpec(shape, lambda b: (0,) * len(shape),
                        pipeline_mode=pl.Buffered(buffer_count=1))


# ----------------------------------------------------------------------------
# Pallas kernels
# ----------------------------------------------------------------------------
def _linear_kernel(a_ref, w_ref, b_ref, o_ref):
    o_ref[...] = (
        jnp.dot(a_ref[...], w_ref[...], preferred_element_type=jnp.float32)
        + b_ref[...]
    )


def pallas_linear(a, w, b, *, tile_m=512):
    """a:[M,K] @ w:[K,N] + b:[N] -> [M,N]; M is tiled so im2col never OOMs VMEM."""
    M, K = a.shape
    N = w.shape[1]
    b2 = b.reshape(1, N)
    if M <= tile_m:
        return pl.pallas_call(
            _linear_kernel,
            out_shape=jax.ShapeDtypeStruct((M, N), jnp.float32),
        )(a, w, b2)
    return pl.pallas_call(
        _linear_kernel,
        out_shape=jax.ShapeDtypeStruct((M, N), jnp.float32),
        grid=(pl.cdiv(M, tile_m),),
        in_specs=[
            pl.BlockSpec((tile_m, K), lambda i: (i, 0)),
            _resident_spec((K, N)),
            _resident_spec((1, N)),
        ],
        out_specs=pl.BlockSpec((tile_m, N), lambda i: (i, 0)),
        compiler_params=pltpu.CompilerParams(
            dimension_semantics=("parallel",), vmem_limit_bytes=_VMEM_LIMIT),
    )(a, w, b2)


def _gn_gelu_core(x, g, b, groups, eps=1e-5):
    """GroupNorm (channel-last, x:(L,C)) + GELU; group reduction via tiny 0/1
    membership matmuls (no data reshape / relayout)."""
    L, C = x.shape
    cg = C // groups
    nf = float(L * cg)
    memb = (jax.lax.broadcasted_iota(jnp.int32, (C, groups), 0) // cg
            == jax.lax.broadcasted_iota(jnp.int32, (C, groups), 1)
            ).astype(jnp.float32)                       # (C, groups)
    memb_t = (jax.lax.broadcasted_iota(jnp.int32, (groups, C), 1) // cg
              == jax.lax.broadcasted_iota(jnp.int32, (groups, C), 0)
              ).astype(jnp.float32)                     # (groups, C)
    s = jnp.sum(x, axis=0, keepdims=True)               # (1, C)
    ss = jnp.sum(x * x, axis=0, keepdims=True)          # (1, C)
    mean_g = jnp.dot(s, memb, preferred_element_type=jnp.float32) / nf
    ex2_g = jnp.dot(ss, memb, preferred_element_type=jnp.float32) / nf
    var_g = ex2_g - mean_g * mean_g
    inv_g = jax.lax.rsqrt(var_g + eps)
    mean_c = jnp.dot(mean_g, memb_t, preferred_element_type=jnp.float32)  # (1, C)
    inv_c = jnp.dot(inv_g, memb_t, preferred_element_type=jnp.float32)    # (1, C)
    xn = (x - mean_c) * inv_c
    return _gelu(xn * g + b)


def _gn_gelu_kernel(x_ref, g_ref, b_ref, o_ref, *, groups):
    o_ref[0] = _gn_gelu_core(x_ref[0], g_ref[...], b_ref[...], groups)


def _gn_gelu_film_kernel(x_ref, g_ref, b_ref, fg_ref, fb_ref, o_ref, *, groups):
    y = _gn_gelu_core(x_ref[0], g_ref[...], b_ref[...], groups)
    o_ref[0] = fg_ref[0] * y + fb_ref[0]   # fused (composed) FiLM epilogue


def group_norm_gelu(x, gamma, beta, groups, film_g=None, film_b=None):
    """x: [B, L, C] channel-last; GroupNorm(groups, C) -> GELU (-> FiLM)."""
    B, L, C = x.shape
    gnw_spec = _resident_spec((1, C))
    in_specs = [pl.BlockSpec((1, L, C), lambda b: (b, 0, 0)), gnw_spec, gnw_spec]
    args = [x, gamma.reshape(1, C), beta.reshape(1, C)]
    if film_g is not None:
        kern = functools.partial(_gn_gelu_film_kernel, groups=groups)
        in_specs += [pl.BlockSpec((1, 1, C), lambda b: (b, 0, 0)),
                     pl.BlockSpec((1, 1, C), lambda b: (b, 0, 0))]
        args += [film_g.reshape(B, 1, C), film_b.reshape(B, 1, C)]
    else:
        kern = functools.partial(_gn_gelu_kernel, groups=groups)
    return pl.pallas_call(
        kern,
        out_shape=jax.ShapeDtypeStruct((B, L, C), x.dtype),
        grid=(B,),
        in_specs=in_specs,
        out_specs=pl.BlockSpec((1, L, C), lambda b: (b, 0, 0)),
        compiler_params=pltpu.CompilerParams(
            dimension_semantics=("parallel",), vmem_limit_bytes=_VMEM_LIMIT),
    )(*args)


def _transformer_layer_kernel(
    x_ref, ln1g, ln1b, wqkv, bqkv, wo, bo, ln2g, ln2b, w1, b1, w2, b2,
    o_ref, pool_ref, *, num_heads,
):
    x = x_ref[0]  # (L, D)
    L, D = x.shape
    dh = D // num_heads
    scale = 1.0 / math.sqrt(dh)

    # --- pre-norm multi-head self-attention (fused QKV, single out-proj) ---
    xn = _layernorm(x, ln1g[...], ln1b[...])
    qkv = jnp.dot(xn, wqkv[...], preferred_element_type=jnp.float32) + bqkv[...]
    q = qkv[:, 0:D]
    k = qkv[:, D:2 * D]
    v = qkv[:, 2 * D:3 * D]

    heads = []
    for h in range(num_heads):
        sl = slice(h * dh, (h + 1) * dh)
        qh = q[:, sl] * scale
        s = jax.lax.dot_general(
            qh, k[:, sl], (((1,), (1,)), ((), ())),
            preferred_element_type=jnp.float32)          # (L, L)
        s = s - jnp.max(s, axis=-1, keepdims=True)
        p = jnp.exp(s)
        p = p * pl.reciprocal(jnp.sum(p, axis=-1, keepdims=True), approx=True)
        heads.append(jnp.dot(p, v[:, sl], preferred_element_type=jnp.float32))
    attn = jnp.concatenate(heads, axis=-1)               # (L, D)
    attn = jnp.dot(attn, wo[...], preferred_element_type=jnp.float32) + bo[...]
    x = x + attn

    # --- pre-norm feed-forward ---
    xn2 = _layernorm(x, ln2g[...], ln2b[...])
    hff = _gelu(jnp.dot(xn2, w1[...], preferred_element_type=jnp.float32) + b1[...])
    hff = jnp.dot(hff, w2[...], preferred_element_type=jnp.float32) + b2[...]
    y = x + hff
    o_ref[0] = y
    # fused global mean-pool epilogue (used after the last layer)
    pool_ref[0] = jnp.mean(y, axis=0, keepdims=True)


def transformer_layer(x, p, num_heads):
    """x: [B, L, D]; one norm_first TransformerEncoderLayer (dropout = id).

    Returns (y, pooled) with pooled = mean over the sequence of y."""
    B, L, D = x.shape
    weights = [
        p["ln1_g"], p["ln1_b"], p["wqkv"], p["bqkv"], p["wo"], p["bo"],
        p["ln2_g"], p["ln2_b"], p["w1"], p["b1"], p["w2"], p["b2"],
    ]
    w_specs = [_resident_spec(w.shape) for w in weights]
    y, pooled = pl.pallas_call(
        functools.partial(_transformer_layer_kernel, num_heads=num_heads),
        out_shape=(jax.ShapeDtypeStruct((B, L, D), x.dtype),
                   jax.ShapeDtypeStruct((B, 1, D), jnp.float32)),
        grid=(B,),
        in_specs=[pl.BlockSpec((1, L, D), lambda b: (b, 0, 0))] + w_specs,
        out_specs=(pl.BlockSpec((1, L, D), lambda b: (b, 0, 0)),
                   pl.BlockSpec((1, 1, D), lambda b: (b, 0, 0))),
        compiler_params=pltpu.CompilerParams(
            dimension_semantics=("parallel",), vmem_limit_bytes=_VMEM_LIMIT),
    )(x, *weights)
    # TODO(synk): for very long L on v7x, stream K/V tiles with an online-softmax
    # accumulator instead of materializing the full (L, L) scores per head.
    return y, pooled.reshape(B, D)


def _peak_enc_kernel(x_ref, w_ref, b_ref, g_ref, bt_ref, o_ref):
    h = (
        jnp.dot(x_ref[...], w_ref[...], preferred_element_type=jnp.float32)
        + b_ref[...]
    )
    mean = jnp.mean(h, axis=-1, keepdims=True)
    var = jnp.mean((h - mean) ** 2, axis=-1, keepdims=True)
    hn = (h - mean) * jax.lax.rsqrt(var + 1e-5)
    o_ref[...] = _gelu(hn * g_ref[...] + bt_ref[...])


def peak_encoder(x, w, b, ln_g, ln_b):
    """x: [B, K] -> Linear -> LayerNorm -> GELU, fused in one kernel."""
    B, _ = x.shape
    N = w.shape[1]
    return pl.pallas_call(
        _peak_enc_kernel, out_shape=jax.ShapeDtypeStruct((B, N), jnp.float32)
    )(x, w, b.reshape(1, N), ln_g.reshape(1, N), ln_b.reshape(1, N))


# ----------------------------------------------------------------------------
# plain-JAX glue
# ----------------------------------------------------------------------------
def im2col(x, K, stride, pad):
    """x: [B, L, Cin] (channel-last) -> cols [B*Lout, K*Cin] (tap-major rows)."""
    B, L, Cin = x.shape
    xp = jnp.pad(x, ((0, 0), (pad, pad), (0, 0)))
    Lout = (L + 2 * pad - K) // stride + 1
    taps = [xp[:, i:i + stride * Lout:stride, :] for i in range(K)]
    cols = jnp.concatenate(taps, axis=-1)                # [B, Lout, K*Cin]
    return cols.reshape(B * Lout, K * Cin), Lout


def conv1d_gn_gelu(x, w, b, gn_g, gn_b, *, K, stride, pad, groups,
                   film_g=None, film_b=None):
    """x: [B, L, Cin] channel-last; w stored as [K*Cin, Cout]."""
    B = x.shape[0]
    Cout = w.shape[1]
    cols, Lout = im2col(x, K, stride, pad)
    y = pallas_linear(cols, w, b).reshape(B, Lout, Cout)   # stays channel-last
    return group_norm_gelu(y, gn_g, gn_b, groups, film_g=film_g, film_b=film_b)


def reparameterize(key, mu, logvar):
    logvar = jnp.clip(logvar, -10.0, 10.0)
    std = jnp.exp(0.5 * logvar)
    eps = jax.random.normal(key, mu.shape, mu.dtype)
    return mu + eps * std


# ----------------------------------------------------------------------------
# parameter init (deterministic, synthetic)
# ----------------------------------------------------------------------------
def _lin_init(key, fan_in, fan_out):
    kw, kb = jax.random.split(key)
    lim = 1.0 / math.sqrt(fan_in)
    w = jax.random.uniform(kw, (fan_in, fan_out), jnp.float32, -lim, lim)
    b = jax.random.uniform(kb, (fan_out,), jnp.float32, -lim, lim)
    return w, b


def init_params(key, cfg):
    D = cfg["hidden_dim"]
    C = cfg["condition_dim"]
    Wl = cfg["waveform_latent_dim"]
    Pl = cfg["peak_latent_dim"]
    nl = cfg["num_layers"]
    p = {}
    ctr = [0]

    def nk():
        ctr[0] += 1
        return jax.random.fold_in(key, ctr[0])

    # conv stack (weights stored as [K*Cin, Cout], tap-major, channel-last im2col)
    p["c1_w"], p["c1_b"] = _lin_init(nk(), 7 * 1, D // 4)
    p["gn1_g"], p["gn1_b"] = jnp.ones((D // 4,)), jnp.zeros((D // 4,))
    p["c2_w"], p["c2_b"] = _lin_init(nk(), 5 * (D // 4), D // 2)
    p["gn2_g"], p["gn2_b"] = jnp.ones((D // 2,)), jnp.zeros((D // 2,))
    p["c3_w"], p["c3_b"] = _lin_init(nk(), 3 * (D // 2), D)
    p["gn3_g"], p["gn3_b"] = jnp.ones((D,)), jnp.zeros((D,))

    # FiLM: all layers' (gamma, beta) projections fused into ONE [C, 2*nl*D] matmul
    fw, fb = [], []
    for _ in range(nl):
        gw, gb = _lin_init(nk(), C, D)
        bw, bb = _lin_init(nk(), C, D)
        fw.append(jnp.concatenate([gw, bw], axis=1))
        fb.append(jnp.concatenate([gb, bb]))
    p["film_w"] = jnp.concatenate(fw, axis=1) if nl else jnp.zeros((C, 0), jnp.float32)
    p["film_b"] = jnp.concatenate(fb) if nl else jnp.zeros((0,), jnp.float32)

    # transformer layers (fused QKV projection)
    p["tf"] = []
    for _ in range(nl):
        lp = {}
        lp["ln1_g"], lp["ln1_b"] = jnp.ones((1, D)), jnp.zeros((1, D))
        lp["ln2_g"], lp["ln2_b"] = jnp.ones((1, D)), jnp.zeros((1, D))
        qw, qb = [], []
        for _ in range(3):
            w_, b_ = _lin_init(nk(), D, D)
            qw.append(w_), qb.append(b_)
        lp["wqkv"] = jnp.concatenate(qw, axis=1)             # [D, 3D]
        lp["bqkv"] = jnp.concatenate(qb).reshape(1, 3 * D)
        wo, bo = _lin_init(nk(), D, D)
        lp["wo"], lp["bo"] = wo, bo.reshape(1, D)
        w1, b1 = _lin_init(nk(), D, 4 * D)
        w2, b2 = _lin_init(nk(), 4 * D, D)
        lp["w1"], lp["b1"] = w1, b1.reshape(1, 4 * D)
        lp["w2"], lp["b2"] = w2, b2.reshape(1, D)
        p["tf"].append(lp)

    # heads (mu/logvar pairs fused into single matmuls)
    p["wstat_w"], p["wstat_b"] = _lin_init(nk(), D, 2 * Wl)
    p["pe_w"], p["pe_b"] = _lin_init(nk(), D + Wl, D // 2)
    p["pe_lng"], p["pe_lnb"] = jnp.ones((D // 2,)), jnp.zeros((D // 2,))
    p["pstat_w"], p["pstat_b"] = _lin_init(nk(), D // 2, 2 * Pl)
    return p


# ----------------------------------------------------------------------------
# full forward pass
# ----------------------------------------------------------------------------
def hierarchical_encoder_forward(params, x, condition, key, cfg):
    D = cfg["hidden_dim"]
    nl = cfg["num_layers"]
    Wl = cfg["waveform_latent_dim"]
    Pl = cfg["peak_latent_dim"]
    B = x.shape[0]

    # FiLM: one matmul for every layer's (gamma, beta), then compose the affine
    # chain on tiny [B, D] tensors (plain JAX) into a single effective FiLM.
    g_eff = jnp.ones((B, D), jnp.float32)
    b_eff = jnp.zeros((B, D), jnp.float32)
    if nl > 0:
        gb = pallas_linear(condition, params["film_w"], params["film_b"])
        for i in range(nl):
            g_i = gb[:, 2 * i * D: 2 * i * D + D]
            b_i = gb[:, 2 * i * D + D: 2 * (i + 1) * D]
            g_eff = g_i * g_eff
            b_eff = g_i * b_eff + b_i

    # conv stack, channel-last [B, L, C] throughout (no NCW<->NLC transposes);
    # the composed FiLM is folded into conv3's GroupNorm+GELU epilogue.
    h = x[:, :, None]
    h = conv1d_gn_gelu(h, params["c1_w"], params["c1_b"],
                       params["gn1_g"], params["gn1_b"],
                       K=7, stride=1, pad=3, groups=4)
    h = conv1d_gn_gelu(h, params["c2_w"], params["c2_b"],
                       params["gn2_g"], params["gn2_b"],
                       K=5, stride=2, pad=2, groups=8)
    h = conv1d_gn_gelu(h, params["c3_w"], params["c3_b"],
                       params["gn3_g"], params["gn3_b"],
                       K=3, stride=2, pad=1, groups=8,
                       film_g=g_eff, film_b=b_eff)

    # transformer encoder (pre-norm); mean-pool fused into the layer kernel
    pooled = None
    for lp in params["tf"]:
        h, pooled = transformer_layer(h, lp, cfg["num_heads"])
    if pooled is None:
        pooled = jnp.mean(h, axis=1)

    # waveform latent (mu & logvar from one fused matmul)
    wstat = pallas_linear(pooled, params["wstat_w"], params["wstat_b"])
    waveform_mu, waveform_logvar = wstat[:, :Wl], wstat[:, Wl:]
    k1, k2 = jax.random.split(key)
    waveform_z = reparameterize(k1, waveform_mu, waveform_logvar)

    # peak latent
    peak_input = jnp.concatenate([pooled, waveform_z], axis=-1)
    peak_feat = peak_encoder(peak_input, params["pe_w"], params["pe_b"],
                             params["pe_lng"], params["pe_lnb"])
    pstat = pallas_linear(peak_feat, params["pstat_w"], params["pstat_b"])
    peak_mu, peak_logvar = pstat[:, :Pl], pstat[:, Pl:]
    peak_z = reparameterize(k2, peak_mu, peak_logvar)

    return {
        "waveform_mu": waveform_mu,
        "waveform_logvar": waveform_logvar,
        "waveform_z": waveform_z,
        "peak_mu": peak_mu,
        "peak_logvar": peak_logvar,
        "peak_z": peak_z,
        "combined_z": jnp.concatenate([waveform_z, peak_z], axis=-1),
    }


# ----------------------------------------------------------------------------
if __name__ == "__main__":
    cfg = {
        "input_dim": 1,
        "condition_dim": 16,
        "hidden_dim": 32,
        "waveform_latent_dim": 8,
        "peak_latent_dim": 4,
        "num_layers": 2,
        "num_heads": 4,
        "sequence_length": 16,
        "batch": 2,
    }

    root = jax.random.PRNGKey(0)
    k_param, k_x, k_c, k_eps = jax.random.split(root, 4)

    params = init_params(k_param, cfg)
    x = jax.random.normal(k_x, (cfg["batch"], cfg["sequence_length"]), jnp.float32)
    condition = jax.random.normal(k_c, (cfg["batch"], cfg["condition_dim"]),
                                  jnp.float32)

    out = hierarchical_encoder_forward(params, x, condition, k_eps, cfg)
    jax.block_until_ready(out)

    assert out["waveform_z"].shape == (cfg["batch"], cfg["waveform_latent_dim"])
    assert out["peak_z"].shape == (cfg["batch"], cfg["peak_latent_dim"])
    assert out["combined_z"].shape == (
        cfg["batch"], cfg["waveform_latent_dim"] + cfg["peak_latent_dim"]
    )
    print("KERNEL_OK")
</pallas_src>

<mosaic_0001>
module attributes {stable_mosaic.version = 11 : i64} {
  func.func @_linear_kernel(%arg0: memref<2x16xf32, #tpu.memory_space<vmem>>, %arg1: memref<16x128xf32, #tpu.memory_space<vmem>>, %arg2: memref<1x128xf32, #tpu.memory_space<vmem>>, %arg3: memref<2x128xf32, #tpu.memory_space<vmem>>) attributes {dimension_semantics = [], scalar_prefetch = 0 : i64, scratch_operands = 0 : i64, tpu.core_type = #tpu.core_type<tc>} {
    %c0 = arith.constant 0 : index
    %c0_0 = arith.constant 0 : index
    %0 = vector.load %arg0[%c0, %c0_0] : memref<2x16xf32, #tpu.memory_space<vmem>>, vector<2x16xf32>
    %c0_1 = arith.constant 0 : index
    %c0_2 = arith.constant 0 : index
    %1 = vector.load %arg1[%c0_1, %c0_2] : memref<16x128xf32, #tpu.memory_space<vmem>>, vector<16x128xf32>
    %cst = arith.constant dense<0.000000e+00> : vector<2x128xf32>
    %2 = tpu.matmul %0, %1, %cst {dimension_numbers = #tpu.dot_dimension_numbers<[1], [0], [0], [1], [0, 0, 1, 1], [], []>} : vector<2x16xf32>, vector<16x128xf32>, vector<2x128xf32> -> vector<2x128xf32>
    %c0_3 = arith.constant 0 : index
    %c0_4 = arith.constant 0 : index
    %3 = vector.load %arg2[%c0_3, %c0_4] : memref<1x128xf32, #tpu.memory_space<vmem>>, vector<1x128xf32>
    %4 = vector.broadcast %3 : vector<1x128xf32> to vector<2x128xf32>
    %5 = arith.addf %2, %4 : vector<2x128xf32>
    %c0_5 = arith.constant 0 : index
    %c0_6 = arith.constant 0 : index
    %6 = vector.load %arg3[%c0_5, %c0_6] : memref<2x128xf32, #tpu.memory_space<vmem>>, vector<2x128xf32>
    tpu.vector_store %arg3[%c0_5, %c0_6], %5 {strides = array<i32>} : memref<2x128xf32, #tpu.memory_space<vmem>>, vector<2x128xf32>,
    return
  }
}

</mosaic_0001>

<llo_original>
// kernel: tpu_custom_call.1
$region0: #{tpu_custom_call.1}
  #allocation0 [shape = 'u32[]', space=smem, size = 0x4, offset = 0x4, fixed_abs, tag = 'smem constant byte address 0x4 - core index']
  #allocation1 [shape = 'u32[72,128]{1,0:T(1,128)}', space=vmem, size = 0x9000, scoped, tag = 'internal scratch']
  %s0 = inlined_call_operand.hbm [shape: f32[2,16], index: 0, kind: input, shape index: {}]
  %s1 = inlined_call_operand.hbm [shape: f32[16,128], index: 1, kind: input, shape index: {}]
  %s2 = inlined_call_operand.vmem [shape: f32[1,128], index: 2, kind: input, shape index: {}]
  %s3 = inlined_call_operand.hbm [shape: f32[2,128], index: 3, kind: output, shape index: {}]
  %s4 = sld [smem:[#allocation0]]
  $region30: #{tpu_custom_call.1} parent=0
    _
  %s6 = ssub.s32 1, %s4
  %s7 = scalar_select 0, %s6, %s4
  $region1: #{tpu_custom_call.1} parent=0
    #allocation2 [shape = 'u8[1024]{0}', space=vmem, size = 0x400, scoped, tag = 'input window, operand 0, single buffered']
    #allocation3 [shape = 's32[1]{0}', space=sflag, size = 0x4, scoped, tag = 'scoped memory for tpu_custom_call.1']
    #allocation4 [shape = 's32[1]{0}', space=sflag, size = 0x4, scoped, tag = 'scoped memory for tpu_custom_call.1']
    #allocation5 [shape = 'u8[8192]{0}', space=vmem, size = 0x2000, scoped, tag = 'input window, operand 1, single buffered']
    #allocation6 [shape = 's32[1]{0}', space=sflag, size = 0x4, scoped, tag = 'scoped memory for tpu_custom_call.1']
    #allocation7 [shape = 'u8[1024]{0}', space=vmem, size = 0x400, scoped, tag = 'output window, operand 0, single buffered']
    %8 = vsyncpa [#allocation3], 0
    %9 = vsyncpa [#allocation6], 0
    %10 = vsyncpa [#allocation4], 0
    // Predicated region
    $region2: #{tpu_custom_call.1} parent=1 // pred_check
      _
    $region3: #{tpu_custom_call.1} parent=1 // pred_check_branch
      %12 = sbr.rel (0) target = $region5
    $region4: #{tpu_custom_call.1} parent=1 // pred_region
      %14 = vsyncadd [#allocation3], 0
      %s16 = sshll.u32 %s0, 4
      %s17 = int_to_ptr.hbm [resolvable:$true] %s16
      %s18 = sshll.u32 [#allocation2], 4
      %s19 = int_to_ptr.vmem [resolvable:$true] %s18
      %21 = dma.hbm_to_vmem [thread:$0]  %s17, 32, %s19, [#allocation3]
    $region5: #{tpu_custom_call.1} parent=1 // pred_fallthru
      _
    // Predicated region
    $region6: #{tpu_custom_call.1} parent=1 // pred_check
      _
    $region7: #{tpu_custom_call.1} parent=1 // pred_check_branch
      %23 = sbr.rel (0) target = $region9
    $region8: #{tpu_custom_call.1} parent=1 // pred_region
      %25 = vsyncadd [#allocation6], 0
      %s26 = sshll.u32 %s1, 4
      %s27 = int_to_ptr.hbm [resolvable:$true] %s26
      %s28 = sshll.u32 [#allocation5], 4
      %s29 = int_to_ptr.vmem [resolvable:$true] %s28
      %34 = dma.hbm_to_vmem [thread:$0]  %s27, 256, %s29, [#allocation6], 128, 128, 8
    $region9: #{tpu_custom_call.1} parent=1 // pred_fallthru
      _
    // Predicated region
    $region10: #{tpu_custom_call.1} parent=1 // pred_check
      _
    $region11: #{tpu_custom_call.1} parent=1 // pred_check_branch
      %36 = sbr.rel (0) target = $region13
    $region12: #{tpu_custom_call.1} parent=1 // pred_region
      _
    $region13: #{tpu_custom_call.1} parent=1 // pred_fallthru
      _
    // Predicated region
    $region14: #{tpu_custom_call.1} parent=1 // pred_check
      _
    $region15: #{tpu_custom_call.1} parent=1 // pred_check_branch
      %38 = sbr.rel (0) target = $region17
    $region16: #{tpu_custom_call.1} parent=1 // pred_region
      %40 = dma.done [#allocation3], 32
    $region17: #{tpu_custom_call.1} parent=1 // pred_fallthru
      _
    // Predicated region
    $region18: #{tpu_custom_call.1} parent=1 // pred_check
      _
    $region19: #{tpu_custom_call.1} parent=1 // pred_check_branch
      %42 = sbr.rel (0) target = $region21
    $region20: #{tpu_custom_call.1} parent=1 // pred_region
      %44 = dma.done [#allocation6], 256
    $region21: #{tpu_custom_call.1} parent=1 // pred_fallthru
      _
    %v45 = vld [vmem:[#allocation2] sm:$0x3]
    %v46 = vld [vmem:[#allocation5] sm:$0xff]
    %v47 = vld [vmem:[#allocation5 + $0x8] sm:$0xff]
    %v48 = vld [vmem:[%s2] sm:$0x1]
    %v50 = vperm.slane %v48, 0
    %vm52 = vcmask 130048
    %v54 = vsel %vm52, %v45, 0
    %56 = vmatpush.msra.mxu0 0.0
    %57 = vmatpush.msra.mxu0 0.0
    %58 = vmatpush.msra.mxu0 0.0
    %59 = vmatpush.msra.mxu0 0.0
    %60 = vmatpush.msra.mxu0 0.0
    %61 = vmatpush.msra.mxu0 0.0
    %62 = vmatpush.msra.mxu0 0.0
    %63 = vmatpush.msra.mxu0 0.0
    %64 = vmatpush.msra.mxu0 0.0
    %65 = vmatpush.msra.mxu0 0.0
    %66 = vmatpush.msra.mxu0 0.0
    %67 = vmatpush.msra.mxu0 0.0
    %68 = vmatpush.msra.mxu0 0.0
    %69 = vmatpush.msra.mxu0 0.0
    %70 = vmatpush.msra.mxu0 %v47
    %71 = vmatpush.msra.mxu0 %v46
    %72 = vmatmul.f32.gmra.mxu0 %v54
    %v73 = vpop.f32.mrf.mxu0
    %v74 = vadd.f32 %v50, %v73
    %75 = vdwg.mxu0
    %76 = vst [vmem:[#allocation7] sm:$0x3] %v74
    // Predicated region
    $region22: #{tpu_custom_call.1} parent=1 // pred_check
      _
    $region23: #{tpu_custom_call.1} parent=1 // pred_check_branch
      %78 = sbr.rel (0) target = $region25
    $region24: #{tpu_custom_call.1} parent=1 // pred_region
      %80 = vsyncadd [#allocation4], 0
      %s82 = sshll.u32 [#allocation7], 4
      %s83 = int_to_ptr.vmem [resolvable:$true] %s82
      %s84 = sshll.u32 %s3, 4
      %s85 = int_to_ptr.hbm [resolvable:$true] %s84
      %87 = dma.vmem_to_hbm [thread:$0]  %s83, 32, %s85, [#allocation4]
    $region25: #{tpu_custom_call.1} parent=1 // pred_fallthru
      _
    // Predicated region
    $region26: #{tpu_custom_call.1} parent=1 // pred_check
      _
    $region27: #{tpu_custom_call.1} parent=1 // pred_check_branch
      %89 = sbr.rel (0) target = $region29
    $region28: #{tpu_custom_call.1} parent=1 // pred_region
      %91 = dma.done [#allocation4], 32
    $region29: #{tpu_custom_call.1} parent=1 // pred_fallthru
      _
    %92 = vsyncpa [#allocation3], 1
    %93 = vsyncpa [#allocation6], 1
    %94 = vsyncpa [#allocation4], 1

</llo_original>
